<compile_context>
chip_gen: v6e
topology: v6e:2x2x1
jax: 0.10.0
libtpu: 0.0.40
codegen_flags: <defaults>
</compile_context>

<pallas_src>
import functools

import jax
import jax.numpy as jnp
from jax.experimental import pallas as pl
from jax.experimental.pallas import tpu as pltpu

EPS = 1e-4
_VMEM_IO_BUDGET_BYTES = 24 * 1024 * 1024   # double-buffered in+out blocks
_VMEM_LIMIT_BYTES = 48 * 1024 * 1024       # scoped limit; safe on v5e/v6e/v7x


def _quantizer_kernel(x_ref, o_ref, scale_ref, zp_ref, *, n_levels):
    x = x_ref[...]

    # --- calibration: per-row (per output channel) min/max reduction.
    #     Reduced in the native dtype (exact for min/max); stats kept in f32.
    xmax = jnp.max(x, axis=-1, keepdims=True).astype(jnp.float32)
    xmin = jnp.min(x, axis=-1, keepdims=True).astype(jnp.float32)
    scale = (xmax - xmin) / n_levels
    scale = jnp.where(scale == 0.0, EPS, scale)
    zero_point = xmin / scale          # per-row divide (cheap, matches module)
    inv_scale = 1.0 / scale            # one exact divide per row; per-element
                                       # path below is a single vmul

    # --- fake quantization (round-half-to-even, same as torch.round) ---
    xf = x.astype(jnp.float32)
    x_int = jnp.clip(jnp.round(xf * inv_scale - zero_point),
                     0.0, float(n_levels - 1))
    x_dequant = (x_int + zero_point) * scale

    o_ref[...] = x_dequant.astype(o_ref.dtype)
    scale_ref[...] = scale.astype(scale_ref.dtype)
    zp_ref[...] = zero_point.astype(zp_ref.dtype)


def _round_down(v, m):
    return (v // m) * m


def _round_up(v, m):
    return ((v + m - 1) // m) * m


def _pick_block_rows(M, N, itemsize):
    """Largest row block whose double-buffered in+out blocks fit the budget."""
    packing = 8 * (4 // itemsize)            # f32: 8, bf16: 16, int8: 32
    # 2x input buffers + 2x output buffers (x dtype) + padded scale/zp blocks.
    bytes_per_row = 4 * N * itemsize + 4 * 128 * 4
    rows = max(packing, _round_down(_VMEM_IO_BUDGET_BYTES // bytes_per_row, packing))
    rows = min(rows, 2048)
    if rows >= M:
        rows = M
    # Keep >= 2 grid steps when possible so the parallel axis feeds both
    # TensorCores on v7x (irrelevant on single-core v5e/v6e).
    if M >= 2 * packing and pl.cdiv(M, rows) < 2:
        rows = min(_round_up(pl.cdiv(M, 2), packing), M)
    return rows


def weight_pc_quantize(x, n_bits=8, block_rows=None):
    """Fused per-channel calibration + fake quant/dequant of a [M, N] weight.

    Returns (x_dequant, scale, zero_point); scale/zero_point are (M, 1),
    matching the PyTorch module's keepdim=True buffers.
    """
    # TODO(synk): the do_calibration=False path (reusing previously stored
    # scale/zero_point nn.Module state) would take them as extra (M, 1)
    # inputs; only the fused calibrate-then-quantize path is implemented here.
    M, N = x.shape
    n_levels = 2 ** n_bits
    itemsize = jnp.dtype(x.dtype).itemsize
    if block_rows is None:
        block_rows = _pick_block_rows(M, N, itemsize)
    block_rows = min(block_rows, M)

    kernel = functools.partial(_quantizer_kernel, n_levels=n_levels)

    out_shapes = (
        jax.ShapeDtypeStruct((M, N), x.dtype),      # x_dequant
        jax.ShapeDtypeStruct((M, 1), jnp.float32),  # scale
        jax.ShapeDtypeStruct((M, 1), jnp.float32),  # zero_point
    )

    grid = (pl.cdiv(M, block_rows),)
    # Each grid step owns `block_rows` full rows so the per-row reduction over
    # the channel axis (N) happens entirely inside one kernel invocation.
    in_specs = [pl.BlockSpec((block_rows, N), lambda i: (i, 0))]
    out_specs = (
        pl.BlockSpec((block_rows, N), lambda i: (i, 0)),
        pl.BlockSpec((block_rows, 1), lambda i: (i, 0)),
        pl.BlockSpec((block_rows, 1), lambda i: (i, 0)),
    )

    return pl.pallas_call(
        kernel,
        out_shape=out_shapes,
        grid_spec=pltpu.PrefetchScalarGridSpec(
            num_scalar_prefetch=0,
            grid=grid,
            in_specs=in_specs,
            out_specs=out_specs,
        ),
        compiler_params=pltpu.CompilerParams(
            dimension_semantics=("parallel",),
            vmem_limit_bytes=_VMEM_LIMIT_BYTES,
        ),
    )(x)


def _reference_strict(x, n_bits=8):
    """Literal translation of the PyTorch module (per-element divide)."""
    n_levels = 2 ** n_bits
    xmax = jnp.max(x, axis=1, keepdims=True)
    xmin = jnp.min(x, axis=1, keepdims=True)
    scale = (xmax - xmin) / n_levels
    scale = jnp.where(scale == 0.0, EPS, scale)
    zp = xmin / scale
    x_int = jnp.clip(jnp.round(x / scale - zp), 0.0, n_levels - 1)
    return (x_int + zp) * scale, scale, zp


def _reference_mirror(x, n_bits=8):
    """Same math with the kernel's per-row-reciprocal formulation (1-ulp
    reformulation of x / scale)."""
    n_levels = 2 ** n_bits
    xmax = jnp.max(x, axis=1, keepdims=True)
    xmin = jnp.min(x, axis=1, keepdims=True)
    scale = (xmax - xmin) / n_levels
    scale = jnp.where(scale == 0.0, EPS, scale)
    zp = xmin / scale
    x_int = jnp.clip(jnp.round(x * (1.0 / scale) - zp), 0.0, n_levels - 1)
    return (x_int + zp) * scale, scale, zp


if __name__ == "__main__":
    key = jax.random.PRNGKey(0)
    # Small weight matrix: 32 output channels x 128 input features.
    x = jax.random.normal(key, (32, 128), dtype=jnp.float32)

    x_dq, scale, zp = weight_pc_quantize(x, n_bits=8)
    jax.block_until_ready((x_dq, scale, zp))

    # Tight check against the reciprocal formulation (same IEEE ops).
    mir_dq, mir_scale, mir_zp = _reference_mirror(x, n_bits=8)
    assert jnp.allclose(x_dq, mir_dq, atol=1e-6, rtol=1e-6)
    assert jnp.allclose(scale, mir_scale, atol=1e-7, rtol=1e-6)
    assert jnp.allclose(zp, mir_zp, atol=1e-5, rtol=1e-6)

    # Semantic check against the literal torch formulation: x*(1/s) vs x/s can
    # flip a rounding bucket at a ~1-ulp .5 boundary, so allow at most 1 level.
    ref_dq, ref_scale, ref_zp = _reference_strict(x, n_bits=8)
    assert jnp.all(jnp.abs(x_dq - ref_dq) <= ref_scale * 1.000001 + 1e-6)
    assert jnp.allclose(scale, ref_scale, atol=1e-7, rtol=1e-6)
    assert jnp.allclose(zp, ref_zp, atol=1e-5, rtol=1e-6)

    print("KERNEL_OK")
</pallas_src>

<mosaic_0001>
module attributes {stable_mosaic.version = 11 : i64} {
  func.func @_quantizer_kernel(%arg0: i32, %arg1: memref<16x128xf32, #tpu.memory_space<vmem>>, %arg2: memref<16x128xf32, #tpu.memory_space<vmem>>, %arg3: memref<16x1xf32, #tpu.memory_space<vmem>>, %arg4: memref<16x1xf32, #tpu.memory_space<vmem>>) attributes {dimension_semantics = [#tpu.dimension_semantics<parallel>], iteration_bounds = array<i64: 2>, scalar_prefetch = 0 : i64, scratch_operands = 0 : i64, tpu.core_type = #tpu.core_type<tc>, window_params = [{transform_indices = @transform_0, window_bounds = array<i64: 16, 128>}, {transform_indices = @transform_1, window_bounds = array<i64: 16, 128>}, {transform_indices = @transform_2, window_bounds = array<i64: 16, 1>}, {transform_indices = @transform_3, window_bounds = array<i64: 16, 1>}]} {
    %c0 = arith.constant 0 : index
    %c0_0 = arith.constant 0 : index
    %0 = vector.load %arg1[%c0, %c0_0] : memref<16x128xf32, #tpu.memory_space<vmem>>, vector<16x128xf32>
    %cst = arith.constant dense<0xFF800000> : vector<16xf32>
    %1 = vector.multi_reduction <maximumf>, %0, %cst [1] : vector<16x128xf32> to vector<16xf32>
    %2 = vector.shape_cast %1 : vector<16xf32> to vector<16x1xf32>
    %cst_1 = arith.constant dense<0x7F800000> : vector<16xf32>
    %3 = vector.multi_reduction <minimumf>, %0, %cst_1 [1] : vector<16x128xf32> to vector<16xf32>
    %4 = vector.shape_cast %3 : vector<16xf32> to vector<16x1xf32>
    %5 = arith.subf %2, %4 : vector<16x1xf32>
    %cst_2 = arith.constant 2.560000e+02 : f32
    %6 = vector.broadcast %cst_2 : f32 to vector<16x1xf32>
    %7 = arith.divf %5, %6 : vector<16x1xf32>
    %cst_3 = arith.constant 0.000000e+00 : f32
    %8 = vector.broadcast %cst_3 : f32 to vector<16x1xf32>
    %9 = arith.cmpf oeq, %7, %8 : vector<16x1xf32>
    %cst_4 = arith.constant 9.99999974E-5 : f32
    %10 = vector.broadcast %cst_4 : f32 to vector<16x1xf32>
    %11 = arith.select %9, %10, %7 : vector<16x1xi1>, vector<16x1xf32>
    %12 = arith.divf %4, %11 : vector<16x1xf32>
    %cst_5 = arith.constant 1.000000e+00 : f32
    %13 = vector.broadcast %cst_5 : f32 to vector<16x1xf32>
    %14 = arith.divf %13, %11 : vector<16x1xf32>
    %15 = vector.broadcast %14 : vector<16x1xf32> to vector<16x128xf32>
    %16 = arith.mulf %0, %15 : vector<16x128xf32>
    %17 = vector.broadcast %12 : vector<16x1xf32> to vector<16x128xf32>
    %18 = arith.subf %16, %17 : vector<16x128xf32>
    %19 = math.roundeven %18 : vector<16x128xf32>
    %cst_6 = arith.constant 0.000000e+00 : f32
    %cst_7 = arith.constant 2.550000e+02 : f32
    %20 = vector.broadcast %cst_6 : f32 to vector<16x128xf32>
    %21 = arith.maximumf %20, %19 : vector<16x128xf32>
    %22 = vector.broadcast %cst_7 : f32 to vector<16x128xf32>
    %23 = arith.minimumf %22, %21 : vector<16x128xf32>
    %24 = vector.broadcast %12 : vector<16x1xf32> to vector<16x128xf32>
    %25 = arith.addf %23, %24 : vector<16x128xf32>
    %26 = vector.broadcast %11 : vector<16x1xf32> to vector<16x128xf32>
    %27 = arith.mulf %25, %26 : vector<16x128xf32>
    %c0_8 = arith.constant 0 : index
    %c0_9 = arith.constant 0 : index
    %28 = vector.load %arg2[%c0_8, %c0_9] : memref<16x128xf32, #tpu.memory_space<vmem>>, vector<16x128xf32>
    tpu.vector_store %arg2[%c0_8, %c0_9], %27 {strides = array<i32>} : memref<16x128xf32, #tpu.memory_space<vmem>>, vector<16x128xf32>,
    %c0_10 = arith.constant 0 : index
    %c0_11 = arith.constant 0 : index
    %29 = vector.load %arg3[%c0_10, %c0_11] : memref<16x1xf32, #tpu.memory_space<vmem>>, vector<16x1xf32>
    tpu.vector_store %arg3[%c0_10, %c0_11], %11 {strides = array<i32>} : memref<16x1xf32, #tpu.memory_space<vmem>>, vector<16x1xf32>,
    %c0_12 = arith.constant 0 : index
    %c0_13 = arith.constant 0 : index
    %30 = vector.load %arg4[%c0_12, %c0_13] : memref<16x1xf32, #tpu.memory_space<vmem>>, vector<16x1xf32>
    tpu.vector_store %arg4[%c0_12, %c0_13], %12 {strides = array<i32>} : memref<16x1xf32, #tpu.memory_space<vmem>>, vector<16x1xf32>,
    return
  }
  func.func @transform_0(%arg0: i32) -> (i32, i32) {
    %c0_i32 = arith.constant 0 : i32
    %c0_i32_0 = arith.constant 0 : i32
    return %arg0, %c0_i32 : i32, i32
  }
  func.func @transform_1(%arg0: i32) -> (i32, i32) {
    %c0_i32 = arith.constant 0 : i32
    %c0_i32_0 = arith.constant 0 : i32
    return %arg0, %c0_i32 : i32, i32
  }
  func.func @transform_2(%arg0: i32) -> (i32, i32) {
    %c0_i32 = arith.constant 0 : i32
    %c0_i32_0 = arith.constant 0 : i32
    return %arg0, %c0_i32 : i32, i32
  }
  func.func @transform_3(%arg0: i32) -> (i32, i32) {
    %c0_i32 = arith.constant 0 : i32
    %c0_i32_0 = arith.constant 0 : i32
    return %arg0, %c0_i32 : i32, i32
  }
}

</mosaic_0001>

<llo_original>
// kernel: tpu_custom_call.1
$region0: #{tpu_custom_call.1}
  #allocation0 [shape = 'u32[]', space=smem, size = 0x4, offset = 0x4, fixed_abs, tag = 'smem constant byte address 0x4 - core index']
  #allocation1 [shape = 'u32[144,128]{1,0:T(1,128)}', space=vmem, size = 0x12000, scoped, tag = 'internal scratch']
  %s0 = inlined_call_operand.hbm [shape: f32[32,128], index: 0, kind: input, shape index: {}]
  %s1 = inlined_call_operand.hbm [shape: f32[32,128], index: 1, kind: output, shape index: {0}]
  %s2 = inlined_call_operand.vmem [shape: f32[32,1], index: 2, kind: output, shape index: {1}]
  %s3 = inlined_call_operand.vmem [shape: f32[32,1], index: 3, kind: output, shape index: {2}]
  %4 = xla_tuple %s1, %s2, %s3
  %s5 = sld [smem:[#allocation0]]
  $region57: #{tpu_custom_call.1} parent=0
    _
  %s7 = ssub.s32 1, %s5
  %s8 = scalar_select 0, %s7, %s5
  $region1: #{tpu_custom_call.1} parent=0
    #allocation2 [shape = 'u8[16384]{0}', space=vmem, size = 0x4000, scoped, tag = 'input window, operand 0']
    #allocation3 [shape = 's32[2]{0}', space=sflag, size = 0x8, scoped, tag = 'scoped memory for tpu_custom_call.1']
    #allocation4 [shape = 's32[2]{0}', space=sflag, size = 0x8, scoped, tag = 'scoped memory for tpu_custom_call.1']
    #allocation5 [shape = 'u8[16384]{0}', space=vmem, size = 0x4000, scoped, tag = 'output window, operand 0']
    %9 = vsyncpa [#allocation3], 0
    %s10 = scalar_lea.sflag [#allocation3], 1
    %11 = vsyncpa %s10, 0
    %12 = vsyncpa [#allocation4], 0
    %s13 = scalar_lea.sflag [#allocation4], 1
    %14 = vsyncpa %s13, 0
    loop: start=0, step=1, limit=4
    $region2: #{tpu_custom_call.1} parent=1 // loop_pre_header
      _
    $region3: #{tpu_custom_call.1} parent=1 // loop_header
      %s16 = sphi 0, %s20
      %p17 = scmp.ge.s32.totalorder %s16, 4
      %s26 = sphi 0, %s28
      %s29 = sphi 0, %s26
      %s30 = sphi 0, %s29
      %s46 = sphi 0, %s30
      %s52 = sphi 0, %s54
      %s55 = sphi 0, %s52
      %s56 = sphi 0, %s55
      %s72 = sphi 0, %s56
      %s78 = sphi 0, %s80
      %s81 = sphi 0, %s78
      %s82 = sphi 0, %s81
      %s98 = sphi 0, %s82
      %s104 = sphi 0, %s106
      %s107 = sphi 0, %s104
      %s108 = sphi 0, %s107
      %s124 = sphi 0, %s108
    $region4: #{tpu_custom_call.1} parent=1 // loop_header_branch
      %19 = sbr.rel (%p17) target = $region8
    $region5: #{tpu_custom_call.1} parent=1 // loop_body
      %s21 = ssub.s32 %s16, 1
      %s22 = ssub.s32 %s16, 2
      %s23 = sadd.s32 %s16, 1
      %s24 = ssub.s32 %s16, %s23
      %p25 = scmp.eq.s32.totalorder %s24, 0
      %s27 = sadd.s32 %s26, 1
      %s28 = scalar_select %p25, %s26, %s27
      %p31 = pneg %p25
      %p32 = scmp.eq.s32.totalorder %s16, 1
      %p33 = por %p31, %p32
      %p34 = scmp.ne.s32.totalorder %s26, %s29
      %p35 = scmp.eq.s32.totalorder %s16, 0
      %p36 = por %p34, %p35
      %p37 = scmp.ne.s32.totalorder %s26, %s29
      %p38 = scmp.eq.s32.totalorder %s21, 1
      %p39 = por %p37, %p38
      %p40 = scmp.ne.s32.totalorder %s29, %s30
      %p41 = scmp.eq.s32.totalorder %s21, 0
      %p42 = por %p40, %p41
      %p43 = scmp.ne.s32.totalorder %s29, %s30
      %p44 = scmp.eq.s32.totalorder %s22, 1
      %p45 = por %p43, %p44
      %p47 = scmp.ne.s32.totalorder %s30, %s46
      %p48 = scmp.eq.s32.totalorder %s22, 0
      %p49 = por %p47, %p48
      %s50 = ssub.s32 %s16, %s23
      %p51 = scmp.eq.s32.totalorder %s50, 0
      %s53 = sadd.s32 %s52, 1
      %s54 = scalar_select %p51, %s52, %s53
      %p57 = pneg %p51
      %p58 = scmp.eq.s32.totalorder %s16, 1
      %p59 = por %p57, %p58
      %p60 = scmp.ne.s32.totalorder %s52, %s55
      %p61 = scmp.eq.s32.totalorder %s16, 0
      %p62 = por %p60, %p61
      %p63 = scmp.ne.s32.totalorder %s52, %s55
      %p64 = scmp.eq.s32.totalorder %s21, 1
      %p65 = por %p63, %p64
      %p66 = scmp.ne.s32.totalorder %s55, %s56
      %p67 = scmp.eq.s32.totalorder %s21, 0
      %p68 = por %p66, %p67
      %p69 = scmp.ne.s32.totalorder %s55, %s56
      %p70 = scmp.eq.s32.totalorder %s22, 1
      %p71 = por %p69, %p70
      %p73 = scmp.ne.s32.totalorder %s56, %s72
      %p74 = scmp.eq.s32.totalorder %s22, 0
      %p75 = por %p73, %p74
      %s76 = ssub.s32 %s16, %s23
      %p77 = scmp.eq.s32.totalorder %s76, 0
      %s79 = sadd.s32 %s78, 1
      %s80 = scalar_select %p77, %s78, %s79
      %p83 = pneg %p77
      %p84 = scmp.eq.s32.totalorder %s16, 1
      %p85 = por %p83, %p84
      %p86 = scmp.ne.s32.totalorder %s78, %s81
      %p87 = scmp.eq.s32.totalorder %s16, 0
      %p88 = por %p86, %p87
      %p89 = scmp.ne.s32.totalorder %s78, %s81
      %p90 = scmp.eq.s32.totalorder %s21, 1
      %p91 = por %p89, %p90
      %p92 = scmp.ne.s32.totalorder %s81, %s82
      %p93 = scmp.eq.s32.totalorder %s21, 0
      %p94 = por %p92, %p93
      %p95 = scmp.ne.s32.totalorder %s81, %s82
      %p96 = scmp.eq.s32.totalorder %s22, 1
      %p97 = por %p95, %p96
      %p99 = scmp.ne.s32.totalorder %s82, %s98
      %p100 = scmp.eq.s32.totalorder %s22, 0
      %p101 = por %p99, %p100
      %s102 = ssub.s32 %s16, %s23
      %p103 = scmp.eq.s32.totalorder %s102, 0
      %s105 = sadd.s32 %s104, 1
      %s106 = scalar_select %p103, %s104, %s105
      %p109 = pneg %p103
      %p110 = scmp.eq.s32.totalorder %s16, 1
      %p111 = por %p109, %p110
      %p112 = scmp.ne.s32.totalorder %s104, %s107
      %p113 = scmp.eq.s32.totalorder %s16, 0
      %p114 = por %p112, %p113
      %p115 = scmp.ne.s32.totalorder %s104, %s107
      %p116 = scmp.eq.s32.totalorder %s21, 1
      %p117 = por %p115, %p116
      %p118 = scmp.ne.s32.totalorder %s107, %s108
      %p119 = scmp.eq.s32.totalorder %s21, 0
      %p120 = por %p118, %p119
      %p121 = scmp.ne.s32.totalorder %s107, %s108
      %p122 = scmp.eq.s32.totalorder %s22, 1
      %p123 = por %p121, %p122
      %p125 = scmp.ne.s32.totalorder %s108, %s124
      %p126 = scmp.eq.s32.totalorder %s22, 0
      %p127 = por %p125, %p126
      %p128 = scmp.le.s32.totalorder 1, %s16
      %p129 = scmp.lt.s32.totalorder %s16, 3
      %p130 = pnand %p128, %p129
      %p131 = pneg %p130
      // Predicated region
      $region9: #{tpu_custom_call.1} parent=5 // pred_check
        _
      $region10: #{tpu_custom_call.1} parent=5 // pred_check_branch
        %133 = sbr.rel (%p130) target = $region12
      $region11: #{tpu_custom_call.1} parent=5 // pred_region
        %s134 = ssub.s32 %s16, 1
      $region12: #{tpu_custom_call.1} parent=5 // pred_fallthru
        _
      %p135 = scmp.lt.s32.totalorder %s16, 2
      // Predicated region
      $region13: #{tpu_custom_call.1} parent=5 // pred_check
        %p136 = pneg %p135
      $region14: #{tpu_custom_call.1} parent=5 // pred_check_branch
        %138 = sbr.rel (%p136) target = $region16
      $region15: #{tpu_custom_call.1} parent=5 // pred_region
        // Predicated region
        $region17: #{tpu_custom_call.1} parent=15 // pred_check
          %p139 = pneg %p36
        $region18: #{tpu_custom_call.1} parent=15 // pred_check_branch
          %141 = sbr.rel (%p139) target = $region20
        $region19: #{tpu_custom_call.1} parent=15 // pred_region
          %s142 = sand.u32 %s26, 1
          %s143 = scalar_lea.sflag [#allocation3], %s142
          %s144 = sand.u32 %s26, 1
          %s145 = smul.addr %s144, 16
          %s146 = scalar_lea.vmem [#allocation2], %s145
          %s147 = smul.u32 2, %s16
          %s149 = ssub.s32 256, 256
          %150 = vsyncadd %s143, %s149
          %s151 = smul.addr %s147, 128
          %s152 = scalar_lea.hbm %s0, %s151
          %s153 = sshll.u32 %s146, 4
          %s154 = int_to_ptr.vmem [resolvable:$true] %s153
          %159 = dma.hbm_to_vmem [thread:$0]  %s152, 256, %s154, %s143, 128, 128, 8
        $region20: #{tpu_custom_call.1} parent=15 // pred_fallthru
          _
      $region16: #{tpu_custom_call.1} parent=5 // pred_fallthru
        _
      %p160 = scmp.le.s32.totalorder 1, %s16
      %p161 = scmp.lt.s32.totalorder %s16, 3
      %p162 = pnand %p160, %p161
      %p163 = pneg %p162
      // Predicated region
      $region21: #{tpu_custom_call.1} parent=5 // pred_check
        _
      $region22: #{tpu_custom_call.1} parent=5 // pred_check_branch
        %165 = sbr.rel (%p162) target = $region24
      $region23: #{tpu_custom_call.1} parent=5 // pred_region
        %s166 = ssub.s32 %s16, 1
        %s167 = sand.u32 %s29, 1
        %s168 = scalar_lea.sflag [#allocation3], %s167
        %s169 = sand.u32 %s29, 1
        %s170 = smul.addr %s169, 16
        %s171 = scalar_lea.vmem [#allocation2], %s170
        // Predicated region
        $region25: #{tpu_custom_call.1} parent=23 // pred_check
          %p172 = pneg %p42
        $region26: #{tpu_custom_call.1} parent=23 // pred_check_branch
          %174 = sbr.rel (%p172) target = $region28
        $region27: #{tpu_custom_call.1} parent=23 // pred_region
          %175 = dma.done %s168, 256
        $region28: #{tpu_custom_call.1} parent=23 // pred_fallthru
          _
        %s176 = sand.u32 %s29, 1
        %s177 = scalar_lea.sflag [#allocation3], %s176
        %s178 = sand.u32 %s29, 1
        %s179 = smul.addr %s178, 16
        %s180 = scalar_lea.vmem [#allocation2], %s179
        %p181 = pneg %p42
        %p182 = pneg %p39
        %p183 = pneg %p68
        %p184 = pneg %p65
        %s185 = sand.u32 %s55, 1
        %s186 = scalar_lea.sflag [#allocation4], %s185
        %s187 = sand.u32 %s55, 1
        %s188 = smul.addr %s187, 16
        %s189 = scalar_lea.vmem [#allocation5], %s188
        %p190 = pneg %p94
        %p191 = pneg %p91
        %s192 = smul.u32 2, %s21
        %p193 = scmp.lt.s32.totalorder %s192, 3
        %s194 = scalar_select %p193, %s192, 3
        %s195 = smul.addr %s194, 8
        %s196 = scalar_lea.vmem %s2, %s195
        %p197 = pneg %p120
        %p198 = pneg %p117
        %s199 = smul.u32 2, %s21
        %p200 = scmp.lt.s32.totalorder %s199, 3
        %s201 = scalar_select %p200, %s199, 3
        %s202 = smul.addr %s201, 8
        %s203 = scalar_lea.vmem %s3, %s202
        %s204 = smul.u32 2, %s21
        %s205 = smul.u32 2, %s21
        %s206 = smul.u32 2, %s21
        %p207 = scmp.lt.s32.totalorder %s206, 3
        %s208 = scalar_select %p207, %s206, 3
        %s209 = smul.addr %s208, 8
        %s210 = scalar_lea.vmem %s2, %s209
        %s211 = smul.u32 2, %s21
        %s212 = smul.u32 2, %s21
        %p213 = scmp.lt.s32.totalorder %s212, 3
        %s214 = scalar_select %p213, %s212, 3
        %s215 = smul.addr %s214, 8
        %s216 = scalar_lea.vmem %s3, %s215
        %s217 = smul.u32 2, %s21
        %v218 = vld [vmem:[%s171] sm:$0xff]
        %v219 = vld [vmem:[%s171 + $0x8] sm:$0xff]
        %220 = vmax.xlane.f32.xlu0 %v218
        %v221 = vpop.xlane.xlu0 %220
        %222 = vmax.xlane.f32.xlu0 %v219
        %v223 = vpop.xlane.xlu0 %222
        %224 = vmin.xlane.f32.xlu0 %v218
        %v225 = vpop.xlane.xlu0 %224
        %226 = vmin.xlane.f32.xlu0 %v219
        %v227 = vpop.xlane.xlu0 %226
        %v228 = vsub.f32 %v221, %v225
        %v229 = vsub.f32 %v223, %v227
        %v230 = vrcp.pop 256.0
        %v231 = vmul.f32 %v228, %v230
        %v232 = vmul.f32 %v229, %v230
        %vm233 = vcmp.eq.f32.partialorder %v231, 0.0
        %vm234 = vcmp.eq.f32.partialorder %v232, 0.0
        %v235 = vsel %vm233, 0.0001, %v231
        %v236 = vsel %vm234, 0.0001, %v232
        %v237 = vrcp.pop %v235
        %v238 = vmul.f32 %v225, %v237
        %v239 = vrcp.pop %v236
        %v240 = vmul.f32 %v227, %v239
        %v241 = vmul.f32 1.0, %v237
        %v242 = vmul.f32 1.0, %v239
        %v243 = vmul.f32 %v218, %v241
        %v244 = vmul.f32 %v219, %v242
        %v245 = vsub.f32 %v243, %v238
        %v246 = vsub.f32 %v244, %v240
        %v247 = vround.ne.pseudo %v245
        %v248 = vround.ne.pseudo %v246
        %v249 = vmax.f32 %v247, 0.0
        %v250 = vmax.f32 %v248, 0.0
        %v251 = vmin.f32 %v249, 255.0
        %v252 = vmin.f32 %v250, 255.0
        %v253 = vadd.f32 %v251, %v238
        %v254 = vadd.f32 %v252, %v240
        %v255 = vmul.f32 %v253, %v235
        %v256 = vmul.f32 %v254, %v236
        %257 = vst [vmem:[%s189] sm:$0xff] %v255
        %258 = vst [vmem:[%s189 + $0x8] sm:$0xff] %v256
        %vm259 = vcmask 7168
        %260 = vst.msk [vmem:[%s210] sm:$0xff] %vm259, %v235
        %261 = vst.msk [vmem:[%s210 + $0x8] sm:$0xff] %vm259, %v236
        %262 = vst.msk [vmem:[%s216] sm:$0xff] %vm259, %v238
        %263 = vst.msk [vmem:[%s216 + $0x8] sm:$0xff] %vm259, %v240
        %s264 = sand.u32 %s55, 1
        %s265 = scalar_lea.sflag [#allocation4], %s264
        %s266 = sand.u32 %s55, 1
        %s267 = smul.addr %s266, 16
        %s268 = scalar_lea.vmem [#allocation5], %s267
        %s269 = smul.u32 2, %s21
        %p270 = scmp.lt.s32.totalorder %s269, 3
        %s271 = scalar_select %p270, %s269, 3
        %s272 = smul.addr %s271, 8
        %s273 = scalar_lea.vmem %s2, %s272
        %s274 = smul.u32 2, %s21
        %p275 = scmp.lt.s32.totalorder %s274, 3
        %s276 = scalar_select %p275, %s274, 3
        %s277 = smul.addr %s276, 8
        %s278 = scalar_lea.vmem %s3, %s277
        // Predicated region
        $region29: #{tpu_custom_call.1} parent=23 // pred_check
          %p279 = pneg %p65
        $region30: #{tpu_custom_call.1} parent=23 // pred_check_branch
          %281 = sbr.rel (%p279) target = $region32
        $region31: #{tpu_custom_call.1} parent=23 // pred_region
          %s282 = smul.u32 2, %s21
          %s284 = ssub.s32 256, 256
          %285 = vsyncadd %s265, %s284
          %s286 = smul.addr %s282, 128
          %s287 = scalar_lea.hbm %s1, %s286
          %s288 = sshll.u32 %s268, 4
          %s289 = int_to_ptr.vmem [resolvable:$true] %s288
          %294 = dma.vmem_to_hbm [thread:$0]  %s289, 256, %s287, %s265, 128, 128, 8
        $region32: #{tpu_custom_call.1} parent=23 // pred_fallthru
          _
        // Predicated region
        $region33: #{tpu_custom_call.1} parent=23 // pred_check
          %p295 = pneg %p91
        $region34: #{tpu_custom_call.1} parent=23 // pred_check_branch
          %297 = sbr.rel (%p295) target = $region36
        $region35: #{tpu_custom_call.1} parent=23 // pred_region
          %s298 = smul.u32 2, %s21
        $region36: #{tpu_custom_call.1} parent=23 // pred_fallthru
          _
        // Predicated region
        $region37: #{tpu_custom_call.1} parent=23 // pred_check
          %p299 = pneg %p117
        $region38: #{tpu_custom_call.1} parent=23 // pred_check_branch
          %301 = sbr.rel (%p299) target = $region40
        $region39: #{tpu_custom_call.1} parent=23 // pred_region
          %s302 = smul.u32 2, %s21
        $region40: #{tpu_custom_call.1} parent=23 // pred_fallthru
          _
      $region24: #{tpu_custom_call.1} parent=5 // pred_fallthru
        _
      %p303 = scmp.le.s32.totalorder 2, %s16
      // Predicated region
      $region41: #{tpu_custom_call.1} parent=5 // pred_check
        %p304 = pneg %p303
      $region42: #{tpu_custom_call.1} parent=5 // pred_check_branch
        %306 = sbr.rel (%p304) target = $region44
      $region43: #{tpu_custom_call.1} parent=5 // pred_region
        %s307 = ssub.s32 %s16, 2
        // Predicated region
        $region45: #{tpu_custom_call.1} parent=43 // pred_check
          %p308 = pneg %p71
        $region46: #{tpu_custom_call.1} parent=43 // pred_check_branch
          %310 = sbr.rel (%p308) target = $region48
        $region47: #{tpu_custom_call.1} parent=43 // pred_region
          %s311 = sand.u32 %s56, 1
          %s312 = scalar_lea.sflag [#allocation4], %s311
          %s313 = sand.u32 %s56, 1
          %s314 = smul.addr %s313, 16
          %s315 = scalar_lea.vmem [#allocation5], %s314
          %316 = dma.done %s312, 256
        $region48: #{tpu_custom_call.1} parent=43 // pred_fallthru
          _
        // Predicated region
        $region49: #{tpu_custom_call.1} parent=43 // pred_check
          %p317 = pneg %p97
        $region50: #{tpu_custom_call.1} parent=43 // pred_check_branch
          %319 = sbr.rel (%p317) target = $region52
        $region51: #{tpu_custom_call.1} parent=43 // pred_region
          %s320 = smul.u32 2, %s22
          %p321 = scmp.lt.s32.totalorder %s320, 3
          %s322 = scalar_select %p321, %s320, 3
          %s323 = smul.addr %s322, 8
          %s324 = scalar_lea.vmem %s2, %s323
        $region52: #{tpu_custom_call.1} parent=43 // pred_fallthru
          _
        // Predicated region
        $region53: #{tpu_custom_call.1} parent=43 // pred_check
          %p325 = pneg %p123
        $region54: #{tpu_custom_call.1} parent=43 // pred_check_branch
          %327 = sbr.rel (%p325) target = $region56
        $region55: #{tpu_custom_call.1} parent=43 // pred_region
          %s328 = smul.u32 2, %s22
          %p329 = scmp.lt.s32.totalorder %s328, 3
          %s330 = scalar_select %p329, %s328, 3
          %s331 = smul.addr %s330, 8
          %s332 = scalar_lea.vmem %s3, %s331
        $region56: #{tpu_custom_call.1} parent=43 // pred_fallthru
          _
      $region44: #{tpu_custom_call.1} parent=5 // pred_fallthru
        _
    $region6: #{tpu_custom_call.1} parent=1 // loop_footer
      %s20 = sadd.s32 1, %s16
    $region7: #{tpu_custom_call.1} parent=1 // loop_footer_branch
      %15 = sbr.rel target = $region3
    $region8: #{tpu_custom_call.1} parent=1 // loop_exit
      _
    %333 = vsyncpa [#allocation3], 1
    %s334 = scalar_lea.sflag [#allocation3], 1
    %335 = vsyncpa %s334, 1
    %336 = vsyncpa [#allocation4], 1
    %s337 = scalar_lea.sflag [#allocation4], 1
    %338 = vsyncpa %s337, 1

</llo_original>
